<compile_context>
chip_gen: v7x
topology: tpu7x:2x2x1
jax: 0.10.0
libtpu: 0.0.40
codegen_flags: <defaults>
</compile_context>

<pallas_src>
import jax
import jax.numpy as jnp
import numpy as np
from jax import lax
from jax.experimental import pallas as pl
from jax.experimental.pallas import tpu as pltpu

_LANES = 128
_SUBLANES = 8


def _round_up(x, m):
    return ((x + m - 1) // m) * m


def _cdiv(a, b):
    return (a + b - 1) // b


def _sublane_multiple(dtype):
    return {4: 8, 2: 16, 1: 32}.get(jnp.dtype(dtype).itemsize, 8)


# ----------------------------- kernels -------------------------------------


def _compute_pred(model_type, x_ref, w_refs, compute_dtype):
    """Forward math on one (tile, Din) row tile.  Matmuls run on the MXU with
    `compute_dtype` (bf16 by default) operands and f32 accumulation; bias add
    and ReLU stay in f32."""
    x = x_ref[...].astype(compute_dtype)
    if model_type == "mlp":
        w1, b1, w2, b2 = w_refs
        h = jnp.dot(x, w1[...], preferred_element_type=jnp.float32) + b1[...]
        h = jnp.maximum(h, 0.0)
        # TODO(synk): nn.Dropout (default p=0 / eval mode) is the identity;
        # training-time dropout masking is not implemented in-kernel.
        return jnp.dot(h.astype(compute_dtype), w2[...],
                       preferred_element_type=jnp.float32) + b2[...]
    w, b = w_refs
    return jnp.dot(x, w[...], preferred_element_type=jnp.float32) + b[...]


def _make_kernel(model_type, has_target, tile_n, n_rows, compute_dtype):
    """Build the kernel body.  tile_n / n_rows are static Python ints."""
    mask_rows = (n_rows % tile_n) != 0   # last block partial -> OOB-row mask

    if has_target:
        def kernel(x_ref, *refs):
            *w_refs, t_ref, pred_ref, loss_ref = refs
            pred = _compute_pred(model_type, x_ref, w_refs, compute_dtype)
            pred_ref[...] = pred.astype(pred_ref.dtype)

            diff = pred - t_ref[...].astype(jnp.float32)
            if mask_rows:
                row = (pl.program_id(0) * tile_n
                       + lax.broadcasted_iota(jnp.int32, (tile_n, 1), 0))
                diff = jnp.where(row < n_rows, diff, 0.0)
            # Un-normalized squared-error partial for this tile; the /N and the
            # cross-tile sum happen in the wrapper (keeps the grid parallel).
            partial = jnp.sum(diff * diff)
            loss_ref[...] = jnp.broadcast_to(partial, loss_ref.shape)
        return kernel

    def kernel(x_ref, *refs):
        *w_refs, pred_ref = refs
        pred = _compute_pred(model_type, x_ref, w_refs, compute_dtype)
        pred_ref[...] = pred.astype(pred_ref.dtype)
    return kernel


def _resident_spec(shape):
    """BlockSpec for a grid-invariant operand (block index never changes):
    single-buffered so it occupies 1x (not 2x) its size in VMEM."""
    idx = lambda i: (0,) * len(shape)
    try:
        return pl.BlockSpec(shape, idx, pipeline_mode=pl.Buffered(1))
    except Exception:                      # older Pallas without pipeline_mode
        return pl.BlockSpec(shape, idx)


# ----------------------------- wrapper --------------------------------------


def word_mapping_forward(model_type, params, input_emb, target_emb=None,
                         tile_n=512, use_bf16_matmul=True):
    """Mirror of WordMapping.forward.

    params:
      'mlp'    -> (w1 (Din,Dout), b1 (Dout,), w2 (Dout,Dout), b2 (Dout,))
      'linear' -> (w (Din,Dout), b (Dout,))
    Returns pred_embs, or (pred_embs, mean(||pred - target||_2^2)) if target given.
    """
    assert model_type in ("mlp", "linear")
    n, din = input_emb.shape
    has_target = target_emb is not None
    in_dtype = input_emb.dtype
    compute_dtype = jnp.bfloat16 if use_bf16_matmul else jnp.float32

    # Weights cast once (small) to the MXU operand dtype; biases stay f32.
    if model_type == "mlp":
        w1, b1, w2, b2 = params
        dout = w1.shape[1]
        weights = (w1.astype(compute_dtype),
                   b1.astype(jnp.float32).reshape(1, dout),
                   w2.astype(compute_dtype),
                   b2.astype(jnp.float32).reshape(1, dout))
    else:
        w, b = params
        dout = w.shape[1]
        weights = (w.astype(compute_dtype),
                   b.astype(jnp.float32).reshape(1, dout))

    in_itemsize = jnp.dtype(in_dtype).itemsize
    cdt_itemsize = jnp.dtype(compute_dtype).itemsize
    t_itemsize = jnp.dtype(target_emb.dtype).itemsize if has_target else 0
    weight_bytes = sum(int(np.prod(wt.shape)) * jnp.dtype(wt.dtype).itemsize
                       for wt in weights)

    # ---- generation-aware VMEM budget ---------------------------------------
    try:
        vmem_cap = int(pltpu.get_tpu_info().vmem_capacity_bytes)
    except Exception:              # unknown chip: assume the tightest (v7x) budget
        vmem_cap = 64 << 20
    budget = int(0.70 * vmem_cap)

    def vmem_estimate(tile):
        per_iter = tile * din * in_itemsize                 # x tile
        per_iter += tile * dout * in_itemsize               # pred tile
        if has_target:
            per_iter += tile * dout * t_itemsize            # target tile
            per_iter += _SUBLANES * _LANES * 4               # loss partial tile
        est = 2 * per_iter                                   # double-buffered I/O
        est += weight_bytes                                  # single-buffered residents
        est += tile * dout * 4                               # f32 pred (pre-cast)
        est += tile * din * cdt_itemsize                     # x cast for the MXU
        if model_type == "mlp":
            est += tile * dout * 4                           # f32 hidden h
            est += tile * dout * cdt_itemsize                # h cast for the MXU
        if has_target:
            est += tile * dout * 4                           # f32 diff
        est += 2 << 20                                       # Mosaic-internal slack
        return est

    # ---- row tile: dtype-aligned, as big as VMEM permits, >=2 tiles for v7x --
    sub = _sublane_multiple(in_dtype)
    if tile_n >= n:
        # split into two tiles when n is large enough so both v7x TCs get work
        tile = _round_up(_cdiv(n, 2), sub) if n >= 512 else n
    else:
        tile = _round_up(tile_n, sub)
    while tile > sub and vmem_estimate(tile) > budget:
        new_tile = _round_up(max(sub, tile // 2), sub)
        if new_tile >= tile:
            break
        tile = new_tile
    if tile >= n:
        tile = n                    # single full-dim row block (always legal)

    num_tiles = _cdiv(n, tile)

    # ---- specs (no padding: full-dim feature blocks, partial last row block) -
    inputs = [input_emb, *weights]
    in_specs = [pl.BlockSpec((tile, din), lambda i: (i, 0))]
    in_specs += [_resident_spec(wt.shape) for wt in weights]
    # TODO(synk): on v5e, if profiling shows exposed DMA on the x/target specs,
    # deepen them to pipeline_mode=pl.Buffered(3) (headroom exists in 128 MiB VMEM).

    out_shape = [jax.ShapeDtypeStruct((n, dout), in_dtype)]
    out_specs = [pl.BlockSpec((tile, dout), lambda i: (i, 0))]

    if has_target:
        inputs.append(target_emb)
        in_specs.append(pl.BlockSpec((tile, dout), lambda i: (i, 0)))
        # one lane-dense (8,128) partial-loss block per tile -> grid stays parallel
        out_shape.append(jax.ShapeDtypeStruct((num_tiles, _SUBLANES, _LANES),
                                              jnp.float32))
        out_specs.append(pl.BlockSpec((1, _SUBLANES, _LANES),
                                      lambda i: (i, 0, 0)))

    kernel = _make_kernel(model_type, has_target, tile, n, compute_dtype)

    est = vmem_estimate(tile)
    vmem_limit = max(int(est * 1.25), 32 << 20)
    vmem_limit = int(min(vmem_limit, vmem_cap - (4 << 20)))

    results = pl.pallas_call(
        kernel,
        grid=(num_tiles,),
        in_specs=in_specs,
        out_specs=out_specs,
        out_shape=out_shape,
        compiler_params=pltpu.CompilerParams(
            dimension_semantics=("parallel",),   # no cross-tile accumulation
            vmem_limit_bytes=vmem_limit,
        ),
    )(*inputs)

    if has_target:
        pred, partials = results
        loss = jnp.sum(partials[:, 0, 0]) / n
        return pred, loss
    return results[0]


# ----------------------------- reference ------------------------------------


def ref_forward(model_type, params, x, t=None, compute_dtype=jnp.float32):
    """Pure-JAX reference mirroring the kernel math (incl. optional bf16 casts)."""
    cast = lambda a: a.astype(compute_dtype)
    if model_type == "mlp":
        w1, b1, w2, b2 = params
        h = jnp.dot(cast(x), cast(w1),
                    preferred_element_type=jnp.float32) + b1.astype(jnp.float32)
        h = jnp.maximum(h, 0.0)
        pred = jnp.dot(cast(h), cast(w2),
                       preferred_element_type=jnp.float32) + b2.astype(jnp.float32)
    else:
        w, b = params
        pred = jnp.dot(cast(x), cast(w),
                       preferred_element_type=jnp.float32) + b.astype(jnp.float32)
    out = pred.astype(x.dtype)
    if t is None:
        return out
    diff = pred - t.astype(jnp.float32)
    return out, jnp.mean(jnp.sum(diff * diff, axis=-1))


# ----------------------------- demo -----------------------------------------


def _uniform(key, shape, fan_in):
    bound = 1.0 / np.sqrt(fan_in)
    return jax.random.uniform(key, shape, jnp.float32, -bound, bound)


if __name__ == "__main__":
    D_IN, D_OUT = 32, 32
    key = jax.random.PRNGKey(0)
    k = jax.random.split(key, 8)

    # Deterministic parameter init (PyTorch-Linear-style uniform bounds).
    mlp_params = (
        _uniform(k[2], (D_IN, D_OUT), D_IN),    # w1
        _uniform(k[3], (D_OUT,), D_IN),         # b1
        _uniform(k[4], (D_OUT, D_OUT), D_OUT),  # w2
        _uniform(k[5], (D_OUT,), D_OUT),        # b2
    )
    lin_params = (
        _uniform(k[6], (D_IN, D_OUT), D_IN),    # w
        _uniform(k[7], (D_OUT,), D_IN),         # b
    )

    # (n, tile_n): aligned single tile; odd single (full-dim) tile; multi-tile
    # with a partial last block (exercises OOB-row masking of the loss).
    for n_rows, tn in ((16, 512), (13, 512), (40, 16)):
        x = jax.random.normal(k[0], (n_rows, D_IN), jnp.float32)
        target = jax.random.normal(k[1], (n_rows, D_OUT), jnp.float32)

        # ---- f32-MXU path (faithful to the PyTorch module) ------------------
        pred_mlp, loss_mlp = word_mapping_forward(
            "mlp", mlp_params, x, target, tile_n=tn, use_bf16_matmul=False)
        jax.block_until_ready((pred_mlp, loss_mlp))
        rp, rl = ref_forward("mlp", mlp_params, x, target)
        np.testing.assert_allclose(np.asarray(pred_mlp), np.asarray(rp),
                                   rtol=1e-5, atol=1e-5)
        np.testing.assert_allclose(float(loss_mlp), float(rl),
                                   rtol=1e-5, atol=1e-5)

        pred_lin, loss_lin = word_mapping_forward(
            "linear", lin_params, x, target, tile_n=tn, use_bf16_matmul=False)
        jax.block_until_ready((pred_lin, loss_lin))
        rp, rl = ref_forward("linear", lin_params, x, target)
        np.testing.assert_allclose(np.asarray(pred_lin), np.asarray(rp),
                                   rtol=1e-5, atol=1e-5)
        np.testing.assert_allclose(float(loss_lin), float(rl),
                                   rtol=1e-5, atol=1e-5)

        pred_only = word_mapping_forward("mlp", mlp_params, x, None,
                                         tile_n=tn, use_bf16_matmul=False)
        jax.block_until_ready(pred_only)
        rp = ref_forward("mlp", mlp_params, x)
        np.testing.assert_allclose(np.asarray(pred_only), np.asarray(rp),
                                   rtol=1e-5, atol=1e-5)

        # ---- default bf16-MXU path (checked against a bf16-aware reference) --
        pred_bf, loss_bf = word_mapping_forward(
            "mlp", mlp_params, x, target, tile_n=tn)
        jax.block_until_ready((pred_bf, loss_bf))
        rp_bf, rl_bf = ref_forward("mlp", mlp_params, x, target,
                                   compute_dtype=jnp.bfloat16)
        np.testing.assert_allclose(np.asarray(pred_bf), np.asarray(rp_bf),
                                   rtol=1e-2, atol=1e-3)
        np.testing.assert_allclose(float(loss_bf), float(rl_bf),
                                   rtol=1e-2, atol=1e-3)

    print("KERNEL_OK")
</pallas_src>

<mosaic_0001>
module attributes {stable_mosaic.version = 11 : i64} {
  func.func @kernel(%arg0: i32, %arg1: memref<16x32xf32, #tpu.memory_space<vmem>>, %arg2: memref<32x32xf32, #tpu.memory_space<vmem>>, %arg3: memref<1x32xf32, #tpu.memory_space<vmem>>, %arg4: memref<32x32xf32, #tpu.memory_space<vmem>>, %arg5: memref<1x32xf32, #tpu.memory_space<vmem>>, %arg6: memref<16x32xf32, #tpu.memory_space<vmem>>, %arg7: memref<16x32xf32, #tpu.memory_space<vmem>>, %arg8: memref<1x8x128xf32, #tpu.memory_space<vmem>>) attributes {dimension_semantics = [#tpu.dimension_semantics<parallel>], iteration_bounds = array<i64: 1>, scalar_prefetch = 0 : i64, scratch_operands = 0 : i64, tpu.core_type = #tpu.core_type<tc>, window_params = [{transform_indices = @transform_0, window_bounds = array<i64: 16, 32>}, {pipeline_mode = #tpu.pipeline_mode<synchronous>, transform_indices = @transform_1, window_bounds = array<i64: 32, 32>}, {pipeline_mode = #tpu.pipeline_mode<synchronous>, transform_indices = @transform_2, window_bounds = array<i64: 1, 32>}, {pipeline_mode = #tpu.pipeline_mode<synchronous>, transform_indices = @transform_3, window_bounds = array<i64: 32, 32>}, {pipeline_mode = #tpu.pipeline_mode<synchronous>, transform_indices = @transform_4, window_bounds = array<i64: 1, 32>}, {transform_indices = @transform_5, window_bounds = array<i64: 16, 32>}, {transform_indices = @transform_6, window_bounds = array<i64: 16, 32>}, {transform_indices = @transform_7, window_bounds = array<i64: 1, 8, 128>}]} {
    %c0 = arith.constant 0 : index
    %c0_0 = arith.constant 0 : index
    %0 = vector.load %arg1[%c0, %c0_0] : memref<16x32xf32, #tpu.memory_space<vmem>>, vector<16x32xf32>
    %c0_1 = arith.constant 0 : index
    %c0_2 = arith.constant 0 : index
    %1 = vector.load %arg2[%c0_1, %c0_2] : memref<32x32xf32, #tpu.memory_space<vmem>>, vector<32x32xf32>
    %cst = arith.constant dense<0.000000e+00> : vector<16x32xf32>
    %2 = tpu.matmul %0, %1, %cst {dimension_numbers = #tpu.dot_dimension_numbers<[1], [0], [0], [1], [0, 0, 1, 1], [], []>} : vector<16x32xf32>, vector<32x32xf32>, vector<16x32xf32> -> vector<16x32xf32>
    %c0_3 = arith.constant 0 : index
    %c0_4 = arith.constant 0 : index
    %3 = vector.load %arg3[%c0_3, %c0_4] : memref<1x32xf32, #tpu.memory_space<vmem>>, vector<1x32xf32>
    %4 = vector.broadcast %3 : vector<1x32xf32> to vector<16x32xf32>
    %5 = arith.addf %2, %4 : vector<16x32xf32>
    %cst_5 = arith.constant 0.000000e+00 : f32
    %6 = vector.broadcast %cst_5 : f32 to vector<16x32xf32>
    %7 = arith.maximumf %5, %6 : vector<16x32xf32>
    %c0_6 = arith.constant 0 : index
    %c0_7 = arith.constant 0 : index
    %8 = vector.load %arg4[%c0_6, %c0_7] : memref<32x32xf32, #tpu.memory_space<vmem>>, vector<32x32xf32>
    %cst_8 = arith.constant dense<0.000000e+00> : vector<16x32xf32>
    %9 = tpu.matmul %7, %8, %cst_8 {dimension_numbers = #tpu.dot_dimension_numbers<[1], [0], [0], [1], [0, 0, 1, 1], [], []>} : vector<16x32xf32>, vector<32x32xf32>, vector<16x32xf32> -> vector<16x32xf32>
    %c0_9 = arith.constant 0 : index
    %c0_10 = arith.constant 0 : index
    %10 = vector.load %arg5[%c0_9, %c0_10] : memref<1x32xf32, #tpu.memory_space<vmem>>, vector<1x32xf32>
    %11 = vector.broadcast %10 : vector<1x32xf32> to vector<16x32xf32>
    %12 = arith.addf %9, %11 : vector<16x32xf32>
    %c0_11 = arith.constant 0 : index
    %c0_12 = arith.constant 0 : index
    %13 = vector.load %arg7[%c0_11, %c0_12] : memref<16x32xf32, #tpu.memory_space<vmem>>, vector<16x32xf32>
    tpu.vector_store %arg7[%c0_11, %c0_12], %12 {strides = array<i32>} : memref<16x32xf32, #tpu.memory_space<vmem>>, vector<16x32xf32>,
    %c0_13 = arith.constant 0 : index
    %c0_14 = arith.constant 0 : index
    %14 = vector.load %arg6[%c0_13, %c0_14] : memref<16x32xf32, #tpu.memory_space<vmem>>, vector<16x32xf32>
    %15 = arith.subf %12, %14 : vector<16x32xf32>
    %16 = arith.mulf %15, %15 : vector<16x32xf32>
    %17 = vector.shape_cast %16 : vector<16x32xf32> to vector<1x16x32xf32>
    %cst_15 = arith.constant dense<0.000000e+00> : vector<1xf32>
    %18 = vector.multi_reduction <add>, %17, %cst_15 [1, 2] : vector<1x16x32xf32> to vector<1xf32>
    %19 = vector.shape_cast %18 : vector<1xf32> to vector<1x1x1xf32>
    %20 = vector.extract %19[0, 0, 0] : f32 from vector<1x1x1xf32>
    %21 = vector.broadcast %20 : f32 to vector<1x8x128xf32>
    %c0_16 = arith.constant 0 : index
    %c0_17 = arith.constant 0 : index
    %c0_18 = arith.constant 0 : index
    %22 = vector.load %arg8[%c0_16, %c0_17, %c0_18] : memref<1x8x128xf32, #tpu.memory_space<vmem>>, vector<1x8x128xf32>
    tpu.vector_store %arg8[%c0_16, %c0_17, %c0_18], %21 {strides = array<i32>} : memref<1x8x128xf32, #tpu.memory_space<vmem>>, vector<1x8x128xf32>,
    return
  }
  func.func @transform_0(%arg0: i32) -> (i32, i32) {
    %c0_i32 = arith.constant 0 : i32
    %c0_i32_0 = arith.constant 0 : i32
    return %arg0, %c0_i32 : i32, i32
  }
  func.func @transform_1(%arg0: i32) -> (i32, i32) {
    %c0_i32 = arith.constant 0 : i32
    %c0_i32_0 = arith.constant 0 : i32
    %c0_i32_1 = arith.constant 0 : i32
    return %c0_i32, %c0_i32_0 : i32, i32
  }
  func.func @transform_2(%arg0: i32) -> (i32, i32) {
    %c0_i32 = arith.constant 0 : i32
    %c0_i32_0 = arith.constant 0 : i32
    %c0_i32_1 = arith.constant 0 : i32
    return %c0_i32, %c0_i32_0 : i32, i32
  }
  func.func @transform_3(%arg0: i32) -> (i32, i32) {
    %c0_i32 = arith.constant 0 : i32
    %c0_i32_0 = arith.constant 0 : i32
    %c0_i32_1 = arith.constant 0 : i32
    return %c0_i32, %c0_i32_0 : i32, i32
  }
  func.func @transform_4(%arg0: i32) -> (i32, i32) {
    %c0_i32 = arith.constant 0 : i32
    %c0_i32_0 = arith.constant 0 : i32
    %c0_i32_1 = arith.constant 0 : i32
    return %c0_i32, %c0_i32_0 : i32, i32
  }
  func.func @transform_5(%arg0: i32) -> (i32, i32) {
    %c0_i32 = arith.constant 0 : i32
    %c0_i32_0 = arith.constant 0 : i32
    return %arg0, %c0_i32 : i32, i32
  }
  func.func @transform_6(%arg0: i32) -> (i32, i32) {
    %c0_i32 = arith.constant 0 : i32
    %c0_i32_0 = arith.constant 0 : i32
    return %arg0, %c0_i32 : i32, i32
  }
  func.func @transform_7(%arg0: i32) -> (i32, i32, i32) {
    %c0_i32 = arith.constant 0 : i32
    %c0_i32_0 = arith.constant 0 : i32
    %c0_i32_1 = arith.constant 0 : i32
    return %arg0, %c0_i32, %c0_i32_0 : i32, i32, i32
  }
}

</mosaic_0001>

<llo_original>
// kernel: tpu_custom_call.1
$region0: #{tpu_custom_call.1}
  #allocation0 [shape = 'u32[]', space=smem, size = 0x4, offset = 0x4, fixed_abs, tag = 'smem constant byte address 0x4 - core index']
  #allocation1 [shape = 'u32[144,128]{1,0:T(1,128)}', space=vmem, size = 0x12000, scoped, tag = 'internal scratch']
  %s0 = inlined_call_operand.hbm [shape: f32[16,32], index: 0, kind: input, shape index: {}]
  %s1 = inlined_call_operand.hbm [shape: f32[32,32], index: 1, kind: input, shape index: {}]
  %s2 = inlined_call_operand.vmem [shape: f32[1,32], index: 2, kind: input, shape index: {}]
  %s3 = inlined_call_operand.hbm [shape: f32[32,32], index: 3, kind: input, shape index: {}]
  %s4 = inlined_call_operand.vmem [shape: f32[1,32], index: 4, kind: input, shape index: {}]
  %s5 = inlined_call_operand.vmem [shape: f32[16,32], index: 5, kind: input, shape index: {}]
  %s6 = inlined_call_operand.hbm [shape: f32[16,32], index: 6, kind: output, shape index: {0}]
  %s7 = inlined_call_operand.hbm [shape: f32[1,8,128], index: 7, kind: output, shape index: {1}]
  %8 = xla_tuple %s6, %s7
  %s9 = sld [smem:[#allocation0]]
  $region54: #{tpu_custom_call.1} parent=0
    _
  %s11 = ssub.s32 1, %s9
  %s12 = scalar_select 0, %s11, %s9
  $region1: #{tpu_custom_call.1} parent=0
    #allocation2 [shape = 'u8[8192]{0}', space=vmem, size = 0x2000, scoped, tag = 'input window, operand 0, single buffered']
    #allocation3 [shape = 's32[1]{0}', space=sflag, size = 0x4, scoped, tag = 'scoped memory for tpu_custom_call.1']
    #allocation4 [shape = 's32[1]{0}', space=sflag, size = 0x4, scoped, tag = 'scoped memory for tpu_custom_call.1']
    #allocation5 [shape = 'u8[16384]{0}', space=vmem, size = 0x4000, scoped, tag = 'input window, operand 1, single buffered']
    #allocation6 [shape = 's32[1]{0}', space=sflag, size = 0x4, scoped, tag = 'scoped memory for tpu_custom_call.1']
    #allocation7 [shape = 'u8[16384]{0}', space=vmem, size = 0x4000, scoped, tag = 'input window, operand 3, single buffered']
    #allocation8 [shape = 'u8[8192]{0}', space=vmem, size = 0x2000, scoped, tag = 'output window, operand 0, single buffered']
    #allocation9 [shape = 'u8[4096]{0}', space=vmem, size = 0x1000, scoped, tag = 'output window, operand 1, single buffered']
    #allocation10 [shape = 's32[1]{0}', space=sflag, size = 0x4, scoped, tag = 'scoped memory for tpu_custom_call.1']
    %13 = vsyncpa [#allocation3], 0
    %14 = vsyncpa [#allocation6], 0
    %15 = vsyncpa [#allocation4], 0
    %16 = vsyncpa [#allocation10], 0
    // Predicated region
    $region2: #{tpu_custom_call.1} parent=1 // pred_check
      _
    $region3: #{tpu_custom_call.1} parent=1 // pred_check_branch
      %18 = sbr.rel (0) target = $region5
    $region4: #{tpu_custom_call.1} parent=1 // pred_region
      %s20 = ssub.s32 256, 256
      %21 = vsyncadd [#allocation3], %s20
      %s22 = sshll.u32 [#allocation2], 4
      %s23 = int_to_ptr.vmem [resolvable:$true] %s22
      %28 = dma.hbm_to_vmem [thread:$0]  %s0, 256, %s23, [#allocation3], 128, 128, 8
    $region5: #{tpu_custom_call.1} parent=1 // pred_fallthru
      _
    // Predicated region
    $region6: #{tpu_custom_call.1} parent=1 // pred_check
      _
    $region7: #{tpu_custom_call.1} parent=1 // pred_check_branch
      %30 = sbr.rel (0) target = $region9
    $region8: #{tpu_custom_call.1} parent=1 // pred_region
      %s32 = ssub.s32 512, 512
      %33 = vsyncadd [#allocation6], %s32
      %s34 = sshll.u32 [#allocation5], 4
      %s35 = int_to_ptr.vmem [resolvable:$true] %s34
      %40 = dma.hbm_to_vmem [thread:$0]  %s1, 512, %s35, [#allocation6], 128, 128, 8
    $region9: #{tpu_custom_call.1} parent=1 // pred_fallthru
      _
    // Predicated region
    $region10: #{tpu_custom_call.1} parent=1 // pred_check
      _
    $region11: #{tpu_custom_call.1} parent=1 // pred_check_branch
      %42 = sbr.rel (0) target = $region13
    $region12: #{tpu_custom_call.1} parent=1 // pred_region
      _
    $region13: #{tpu_custom_call.1} parent=1 // pred_fallthru
      _
    // Predicated region
    $region14: #{tpu_custom_call.1} parent=1 // pred_check
      _
    $region15: #{tpu_custom_call.1} parent=1 // pred_check_branch
      %44 = sbr.rel (0) target = $region17
    $region16: #{tpu_custom_call.1} parent=1 // pred_region
      %s46 = ssub.s32 512, 512
      %47 = vsyncadd [#allocation6], %s46
      %s48 = sshll.u32 [#allocation7], 4
      %s49 = int_to_ptr.vmem [resolvable:$true] %s48
      %54 = dma.hbm_to_vmem [thread:$0]  %s3, 512, %s49, [#allocation6], 128, 128, 8
    $region17: #{tpu_custom_call.1} parent=1 // pred_fallthru
      _
    // Predicated region
    $region18: #{tpu_custom_call.1} parent=1 // pred_check
      _
    $region19: #{tpu_custom_call.1} parent=1 // pred_check_branch
      %56 = sbr.rel (0) target = $region21
    $region20: #{tpu_custom_call.1} parent=1 // pred_region
      _
    $region21: #{tpu_custom_call.1} parent=1 // pred_fallthru
      _
    // Predicated region
    $region22: #{tpu_custom_call.1} parent=1 // pred_check
      _
    $region23: #{tpu_custom_call.1} parent=1 // pred_check_branch
      %58 = sbr.rel (0) target = $region25
    $region24: #{tpu_custom_call.1} parent=1 // pred_region
      _
    $region25: #{tpu_custom_call.1} parent=1 // pred_fallthru
      _
    // Predicated region
    $region26: #{tpu_custom_call.1} parent=1 // pred_check
      _
    $region27: #{tpu_custom_call.1} parent=1 // pred_check_branch
      %60 = sbr.rel (0) target = $region29
    $region28: #{tpu_custom_call.1} parent=1 // pred_region
      %61 = dma.done [#allocation3], 256
    $region29: #{tpu_custom_call.1} parent=1 // pred_fallthru
      _
    // Predicated region
    $region30: #{tpu_custom_call.1} parent=1 // pred_check
      _
    $region31: #{tpu_custom_call.1} parent=1 // pred_check_branch
      %63 = sbr.rel (0) target = $region33
    $region32: #{tpu_custom_call.1} parent=1 // pred_region
      %64 = dma.done [#allocation6], 512
    $region33: #{tpu_custom_call.1} parent=1 // pred_fallthru
      _
    // Predicated region
    $region34: #{tpu_custom_call.1} parent=1 // pred_check
      _
    $region35: #{tpu_custom_call.1} parent=1 // pred_check_branch
      %66 = sbr.rel (0) target = $region37
    $region36: #{tpu_custom_call.1} parent=1 // pred_region
      %67 = dma.done [#allocation6], 512
    $region37: #{tpu_custom_call.1} parent=1 // pred_fallthru
      _
    %v68 = vld [vmem:[#allocation2] sm:$0xff]
    %v69 = vld [vmem:[#allocation2 + $0x8] sm:$0xff]
    %v70 = vld [vmem:[#allocation5] sm:$0xff]
    %v71 = vld [vmem:[#allocation5 + $0x8] sm:$0xff]
    %v72 = vld [vmem:[#allocation5 + $0x10] sm:$0xff]
    %v73 = vld [vmem:[#allocation5 + $0x18] sm:$0xff]
    %v74 = vld [vmem:[%s2] sm:$0x1]
    %v76 = vlaneseq
    %v77 = vshrl.u32 %v76, 7
    %v78 = vsub.s32 0, %v77
    %v79 = vrot.slane %v74, %v78
    %vm81 = vcmask 261120
    %v83 = vsel %vm81, %v68, 0
    %v86 = vsel %vm81, %v69, 0
    %88 = vmatprep.subr.mxu0 0.0
    %89 = vmatpush1.msra.mxu0 %v70
    %90 = vmatprep.subr.mxu0 0.0
    %91 = vmatpush1.msra.mxu0 %v71
    %92 = vmatprep.subr.mxu0 0.0
    %93 = vmatpush1.msra.mxu0 %v72
    %94 = vmatprep.subr.mxu0 0.0
    %95 = vmatpush1.msra.mxu0 %v73
    %96 = vmatprep.subr.mxu0 0.0
    %97 = vmatpush1.msra.mxu0 0.0
    %98 = vmatprep.subr.mxu0 0.0
    %99 = vmatpush1.msra.mxu0 0.0
    %100 = vmatprep.subr.mxu0 0.0
    %101 = vmatpush1.msra.mxu0 0.0
    %102 = vmatprep.subr.mxu0 0.0
    %103 = vmatpush1.msra.mxu0 0.0
    %104 = vmatprep.subr.mxu0 0.0
    %105 = vmatpush1.msra.mxu0 0.0
    %106 = vmatprep.subr.mxu0 0.0
    %107 = vmatpush1.msra.mxu0 0.0
    %108 = vmatprep.subr.mxu0 0.0
    %109 = vmatpush1.msra.mxu0 0.0
    %110 = vmatprep.subr.mxu0 0.0
    %111 = vmatpush1.msra.mxu0 0.0
    %112 = vmatprep.subr.mxu0 0.0
    %113 = vmatpush1.msra.mxu0 0.0
    %114 = vmatprep.subr.mxu0 0.0
    %115 = vmatpush1.msra.mxu0 0.0
    %116 = vmatprep.subr.mxu0 0.0
    %117 = vmatpush1.msra.mxu0 0.0
    %118 = vmatprep.subr.mxu0 0.0
    %119 = vmatpush1.msra.mxu0 0.0
    %120 = vmatprep.subr.mxu0 0.0
    %121 = vmatpush1.msra.mxu0 0.0
    %122 = vmatprep.subr.mxu0 0.0
    %123 = vmatpush1.msra.mxu0 0.0
    %124 = vmatprep.subr.mxu0 0.0
    %125 = vmatpush1.msra.mxu0 0.0
    %126 = vmatprep.subr.mxu0 0.0
    %127 = vmatpush1.msra.mxu0 0.0
    %128 = vmatprep.subr.mxu0 0.0
    %129 = vmatpush1.msra.mxu0 0.0
    %130 = vmatprep.subr.mxu0 0.0
    %131 = vmatpush1.msra.mxu0 0.0
    %132 = vmatprep.subr.mxu0 0.0
    %133 = vmatpush1.msra.mxu0 0.0
    %134 = vmatprep.subr.mxu0 0.0
    %135 = vmatpush1.msra.mxu0 0.0
    %136 = vmatprep.subr.mxu0 0.0
    %137 = vmatpush1.msra.mxu0 0.0
    %138 = vmatprep.subr.mxu0 0.0
    %139 = vmatpush1.msra.mxu0 0.0
    %140 = vmatprep.subr.mxu0 0.0
    %141 = vmatpush1.msra.mxu0 0.0
    %142 = vmatprep.subr.mxu0 0.0
    %143 = vmatpush1.msra.mxu0 0.0
    %144 = vmatprep.subr.mxu0 0.0
    %145 = vmatpush1.msra.mxu0 0.0
    %146 = vmatprep.subr.mxu0 0.0
    %147 = vmatpush1.msra.mxu0 0.0
    %148 = vmatprep.subr.mxu0 0.0
    %149 = vmatpush1.msra.mxu0 0.0
    %150 = vmatprep.subr.mxu0 0.0
    %151 = vmatpush1.msra.mxu0 0.0
    %152 = vmatprep.mubr.f32.mxu0 0.0
    %153 = vmatmul.mubr.f32.gmra.mrb[0].mxu0 %v83
    %v154 = vpop.f32.mrb[0].mxu0
    %v155 = vadd.f32 %v79, %v154
    %v156 = vpop.f32.mrb[0].mxu0
    %157 = vmatprep.mubr.f32.mxu0 0.0
    %158 = vmatmul.mubr.f32.gmra.mrb[0].mxu0 %v86
    %v159 = vpop.f32.mrb[0].mxu0
    %v160 = vadd.f32 %v79, %v159
    %v161 = vpop.f32.mrb[0].mxu0
    %162 = vdwg.mxu0
    %v163 = vmax.f32 %v155, 0.0
    %v164 = vmax.f32 %v160, 0.0
    %v165 = vld [vmem:[#allocation7] sm:$0xff]
    %v166 = vld [vmem:[#allocation7 + $0x8] sm:$0xff]
    %v167 = vld [vmem:[#allocation7 + $0x10] sm:$0xff]
    %v168 = vld [vmem:[#allocation7 + $0x18] sm:$0xff]
    %v169 = vld [vmem:[%s4] sm:$0x1]
    %v171 = vlaneseq
    %v172 = vshrl.u32 %v171, 7
    %v173 = vsub.s32 0, %v172
    %v174 = vrot.slane %v169, %v173
    %v177 = vsel %vm81, %v163, 0
    %v180 = vsel %vm81, %v164, 0
    %182 = vmatprep.subr.mxu0 0.0
    %183 = vmatpush1.msra.mxu0 %v165
    %184 = vmatprep.subr.mxu0 0.0
    %185 = vmatpush1.msra.mxu0 %v166
    %186 = vmatprep.subr.mxu0 0.0
    %187 = vmatpush1.msra.mxu0 %v167
    %188 = vmatprep.subr.mxu0 0.0
    %189 = vmatpush1.msra.mxu0 %v168
    %190 = vmatprep.subr.mxu0 0.0
    %191 = vmatpush1.msra.mxu0 0.0
    %192 = vmatprep.subr.mxu0 0.0
    %193 = vmatpush1.msra.mxu0 0.0
    %194 = vmatprep.subr.mxu0 0.0
    %195 = vmatpush1.msra.mxu0 0.0
    %196 = vmatprep.subr.mxu0 0.0
    %197 = vmatpush1.msra.mxu0 0.0
    %198 = vmatprep.subr.mxu0 0.0
    %199 = vmatpush1.msra.mxu0 0.0
    %200 = vmatprep.subr.mxu0 0.0
    %201 = vmatpush1.msra.mxu0 0.0
    %202 = vmatprep.subr.mxu0 0.0
    %203 = vmatpush1.msra.mxu0 0.0
    %204 = vmatprep.subr.mxu0 0.0
    %205 = vmatpush1.msra.mxu0 0.0
    %206 = vmatprep.subr.mxu0 0.0
    %207 = vmatpush1.msra.mxu0 0.0
    %208 = vmatprep.subr.mxu0 0.0
    %209 = vmatpush1.msra.mxu0 0.0
    %210 = vmatprep.subr.mxu0 0.0
    %211 = vmatpush1.msra.mxu0 0.0
    %212 = vmatprep.subr.mxu0 0.0
    %213 = vmatpush1.msra.mxu0 0.0
    %214 = vmatprep.subr.mxu0 0.0
    %215 = vmatpush1.msra.mxu0 0.0
    %216 = vmatprep.subr.mxu0 0.0
    %217 = vmatpush1.msra.mxu0 0.0
    %218 = vmatprep.subr.mxu0 0.0
    %219 = vmatpush1.msra.mxu0 0.0
    %220 = vmatprep.subr.mxu0 0.0
    %221 = vmatpush1.msra.mxu0 0.0
    %222 = vmatprep.subr.mxu0 0.0
    %223 = vmatpush1.msra.mxu0 0.0
    %224 = vmatprep.subr.mxu0 0.0
    %225 = vmatpush1.msra.mxu0 0.0
    %226 = vmatprep.subr.mxu0 0.0
    %227 = vmatpush1.msra.mxu0 0.0
    %228 = vmatprep.subr.mxu0 0.0
    %229 = vmatpush1.msra.mxu0 0.0
    %230 = vmatprep.subr.mxu0 0.0
    %231 = vmatpush1.msra.mxu0 0.0
    %232 = vmatprep.subr.mxu0 0.0
    %233 = vmatpush1.msra.mxu0 0.0
    %234 = vmatprep.subr.mxu0 0.0
    %235 = vmatpush1.msra.mxu0 0.0
    %236 = vmatprep.subr.mxu0 0.0
    %237 = vmatpush1.msra.mxu0 0.0
    %238 = vmatprep.subr.mxu0 0.0
    %239 = vmatpush1.msra.mxu0 0.0
    %240 = vmatprep.subr.mxu0 0.0
    %241 = vmatpush1.msra.mxu0 0.0
    %242 = vmatprep.subr.mxu0 0.0
    %243 = vmatpush1.msra.mxu0 0.0
    %244 = vmatprep.subr.mxu0 0.0
    %245 = vmatpush1.msra.mxu0 0.0
    %246 = vmatprep.mubr.f32.mxu0 0.0
    %247 = vmatmul.mubr.f32.gmra.mrb[0].mxu0 %v177
    %v248 = vpop.f32.mrb[0].mxu0
    %v249 = vadd.f32 %v174, %v248
    %v250 = vpop.f32.mrb[0].mxu0
    %251 = vmatprep.mubr.f32.mxu0 0.0
    %252 = vmatmul.mubr.f32.gmra.mrb[0].mxu0 %v180
    %v253 = vpop.f32.mrb[0].mxu0
    %v254 = vadd.f32 %v174, %v253
    %v255 = vpop.f32.mrb[0].mxu0
    %256 = vdwg.mxu0
    %257 = vst.msk [vmem:[#allocation8] sm:$0xff] %vm81, %v249
    %258 = vst.msk [vmem:[#allocation8 + $0x8] sm:$0xff] %vm81, %v254
    %v259 = vld [vmem:[%s5] sm:$0xff]
    %v260 = vld [vmem:[%s5 + $0x8] sm:$0xff]
    %v261 = vsub.f32 %v249, %v259
    %v262 = vsub.f32 %v254, %v260
    %v263 = vmul.f32 %v261, %v261
    %v264 = vmul.f32 %v262, %v262
    %v265 = vsel %vm81, %v263, 0.0
    %v266 = vsel %vm81, %v264, 0.0
    %v267 = vadd.f32 %v265, %v266
    %268 = vadd.xlane.f32.xlu0 %v267
    %v269 = vpop.xlane.xlu0 %268
    %v270 = vrot.slane %v269, 4
    %v271 = vadd.f32 %v269, %v270
    %v272 = vrot.slane %v271, 2
    %v273 = vadd.f32 %v271, %v272
    %v274 = vrot.slane %v273, 1
    %v275 = vadd.f32 %v273, %v274
    %s276 = vtos %v275
    %v277 = vstv %s276
    %278 = vst [vmem:[#allocation9] sm:$0xff] %v277
    // Predicated region
    $region38: #{tpu_custom_call.1} parent=1 // pred_check
      _
    $region39: #{tpu_custom_call.1} parent=1 // pred_check_branch
      %280 = sbr.rel (0) target = $region41
    $region40: #{tpu_custom_call.1} parent=1 // pred_region
      %s282 = ssub.s32 256, 256
      %283 = vsyncadd [#allocation4], %s282
      %s284 = sshll.u32 [#allocation8], 4
      %s285 = int_to_ptr.vmem [resolvable:$true] %s284
      %290 = dma.vmem_to_hbm [thread:$0]  %s285, 256, %s6, [#allocation4], 128, 128, 8
    $region41: #{tpu_custom_call.1} parent=1 // pred_fallthru
      _
    // Predicated region
    $region42: #{tpu_custom_call.1} parent=1 // pred_check
      _
    $region43: #{tpu_custom_call.1} parent=1 // pred_check_branch
      %292 = sbr.rel (0) target = $region45
    $region44: #{tpu_custom_call.1} parent=1 // pred_region
      %s294 = ssub.s32 128, 128
      %295 = vsyncadd [#allocation10], %s294
      %s297 = sshll.u32 [#allocation9], 4
      %s298 = int_to_ptr.vmem [resolvable:$true] %s297
      %300 = dma.vmem_to_hbm [thread:$0]  %s298, 128, %s7, [#allocation10]
    $region45: #{tpu_custom_call.1} parent=1 // pred_fallthru
      _
    // Predicated region
    $region46: #{tpu_custom_call.1} parent=1 // pred_check
      _
    $region47: #{tpu_custom_call.1} parent=1 // pred_check_branch
      %302 = sbr.rel (0) target = $region49
    $region48: #{tpu_custom_call.1} parent=1 // pred_region
      %303 = dma.done [#allocation4], 256
    $region49: #{tpu_custom_call.1} parent=1 // pred_fallthru
      _
    // Predicated region
    $region50: #{tpu_custom_call.1} parent=1 // pred_check
      _
    $region51: #{tpu_custom_call.1} parent=1 // pred_check_branch
      %305 = sbr.rel (0) target = $region53
    $region52: #{tpu_custom_call.1} parent=1 // pred_region
      %306 = dma.done [#allocation10], 128
    $region53: #{tpu_custom_call.1} parent=1 // pred_fallthru
      _
    %307 = vsyncpa [#allocation3], 1
    %308 = vsyncpa [#allocation6], 1
    %309 = vsyncpa [#allocation4], 1
    %310 = vsyncpa [#allocation10], 1

</llo_original>
